<compile_context>
chip_gen: v5e
topology: v5e:2x2
jax: 0.10.0
libtpu: 0.0.40
codegen_flags: <defaults>
</compile_context>

<pallas_src>
import functools

import jax
import jax.numpy as jnp
from jax.experimental import pallas as pl
from jax.experimental.pallas import tpu as pltpu

_LANE = 128
_VMEM_LIMIT = 32 * 1024 * 1024          # scoped VMEM cap; safe on v5e/v6e/v7x
_TILE_MAX_BYTES = 2 * 1024 * 1024       # per-block budget for tiled kernels
_TILE_MAX_LANES = 2048                  # roofline plateaus >= 512 lanes
_FUSED_MAX_SLAB_BYTES = 2 * 1024 * 1024  # per-batch (C, HW) f32 slab for fusion


def _round_up(x, m):
    return (x + m - 1) // m * m


def _pick_hw_tile(hw, c):
    """Lane tile (multiple of 128); grid uses cdiv + masked tail, so any HW works."""
    by_bytes = max(_LANE, (_TILE_MAX_BYTES // (4 * c)) // _LANE * _LANE)
    t = min(by_bytes, _TILE_MAX_LANES, _round_up(hw, _LANE))
    return max(_LANE, t)


# -----------------------------------------------------------------------------
# Fused single-pass kernel (small/medium images): pool -> MLP -> scale + conv.
# Grid (B,), block (1, C, HW) resident; x is read from HBM exactly once.
# -----------------------------------------------------------------------------
def _fused_kernel(x_ref, w1_ref, b1_ref, w2t_ref, b2_ref, wc_ref, bc_ref,
                  o_ref, *, hw):
    x = x_ref[0]                                            # (C, HW) f32
    avg = jnp.sum(x, axis=-1, keepdims=True) * (1.0 / hw)   # (C, 1)
    mx = jnp.max(x, axis=-1, keepdims=True)                 # (C, 1)

    w1 = w1_ref[...]        # (C, hidden)
    b1 = b1_ref[...]        # (1, hidden)
    w2t = w2t_ref[...]      # (C, hidden)  (= w2 transposed)
    b2 = b2_ref[...]        # (C, 1)

    def branch(v_col):      # v_col: (C, 1)
        # Tiny MLP done with broadcast-mul + reduces (no transposes, no tiny
        # matmuls): h[j] = relu(sum_c w1[c,j] * v[c] + b1[j])
        h = jnp.maximum(jnp.sum(w1 * v_col, axis=0, keepdims=True) + b1, 0.0)
        # z[c] = sum_j w2t[c,j] * h[j] + b2[c]
        z = jnp.sum(w2t * h, axis=1, keepdims=True) + b2
        return jax.nn.sigmoid(z)                             # (C, 1)

    w_att = branch(avg) + branch(mx)                         # (C, 1)

    # In-kernel scale (weight only exists here); one VPU pass on a resident
    # VMEM tile, hidden under the HBM stream.
    y = jnp.dot(wc_ref[...], x * w_att, preferred_element_type=jnp.float32)
    o_ref[0] = (y + bc_ref[...]).astype(o_ref.dtype)


# -----------------------------------------------------------------------------
# Phase A (two-phase path): streaming pooled stats over HW.
# x block (1, C, Tp); outputs are resident (1, C, 128) VPU accumulators; the
# final 128-lane reduce happens in XLA glue.
# -----------------------------------------------------------------------------
def _pool_kernel(x_ref, sum_ref, max_ref, *, tp, hw, needs_mask):
    t = pl.program_id(1)
    x = x_ref[0]                                             # (C, Tp)
    c = x.shape[0]

    if needs_mask:
        col = t * tp + jax.lax.broadcasted_iota(jnp.int32, (c, tp), 1)
        valid = col < hw
        x_s = jnp.where(valid, x, 0.0)
        x_m = jnp.where(valid, x, -jnp.inf)
    else:
        x_s = x
        x_m = x

    # VPU accumulation over 128-lane chunks (keeps the XLU out of the loop).
    acc_s = x_s[:, 0:_LANE]
    acc_m = x_m[:, 0:_LANE]
    for j in range(1, tp // _LANE):
        sl = slice(j * _LANE, (j + 1) * _LANE)
        acc_s = acc_s + x_s[:, sl]
        acc_m = jnp.maximum(acc_m, x_m[:, sl])

    @pl.when(t == 0)
    def _():
        sum_ref[0] = acc_s
        max_ref[0] = acc_m

    @pl.when(t > 0)
    def _():
        sum_ref[0] = sum_ref[0] + acc_s
        max_ref[0] = jnp.maximum(max_ref[0], acc_m)


# -----------------------------------------------------------------------------
# Phase B (two-phase path): 1x1 conv with the per-batch channel attention
# pre-folded into the weight: y = wc_eff[b] @ x + bc.  Lane-dense output tiles.
# -----------------------------------------------------------------------------
def _conv1x1_kernel(x_ref, wc_ref, bc_ref, o_ref):
    y = jnp.dot(wc_ref[0], x_ref[0], preferred_element_type=jnp.float32)
    o_ref[0] = (y + bc_ref[...]).astype(o_ref.dtype)


def attention_forward(x_nchw, params, *, fused_slab_bytes=_FUSED_MAX_SLAB_BYTES):
    """x_nchw: (B, C, H, W) float32. Returns (B, C, H, W) float32."""
    B, C, H, W = x_nchw.shape
    HW = H * W
    hidden = params["w1"].shape[1]
    x = x_nchw.reshape(B, C, HW)                 # free reshape, NCHW contiguous

    # ---------------- fused single-pass path (2 HBM passes) ------------------
    if C * HW * 4 <= fused_slab_bytes:
        fused = functools.partial(_fused_kernel, hw=HW)
        out = pl.pallas_call(
            fused,
            out_shape=jax.ShapeDtypeStruct((B, C, HW), jnp.float32),
            grid_spec=pltpu.PrefetchScalarGridSpec(
                num_scalar_prefetch=0,
                grid=(B,),
                in_specs=[
                    pl.BlockSpec((1, C, HW), lambda b: (b, 0, 0)),     # x
                    pl.BlockSpec((C, hidden), lambda b: (0, 0)),       # w1
                    pl.BlockSpec((1, hidden), lambda b: (0, 0)),       # b1
                    pl.BlockSpec((C, hidden), lambda b: (0, 0)),       # w2^T
                    pl.BlockSpec((C, 1), lambda b: (0, 0)),            # b2
                    pl.BlockSpec((C, C), lambda b: (0, 0)),            # wc
                    pl.BlockSpec((C, 1), lambda b: (0, 0)),            # bc
                ],
                out_specs=pl.BlockSpec((1, C, HW), lambda b: (b, 0, 0)),
            ),
            compiler_params=pltpu.CompilerParams(
                dimension_semantics=("parallel",),
                vmem_limit_bytes=_VMEM_LIMIT),
        )(x, params["w1"], params["b1"].reshape(1, hidden), params["w2"].T,
          params["b2"].reshape(C, 1), params["wc"], params["bc"].reshape(C, 1))
        return out.reshape(B, C, H, W)

    # ---------------- two-phase tiled path (large images) --------------------
    # Phase A: streaming pooling over HW (cdiv grid, masked tail).
    tp = _pick_hw_tile(HW, C)
    n_t = pl.cdiv(HW, tp)
    pool = functools.partial(_pool_kernel, tp=tp, hw=HW,
                             needs_mask=(HW % tp) != 0)
    # NOTE: on v7x with B == 1 this leaves one TensorCore idle; splitting the
    # HW reduction over a leading size-2 parallel axis would recover ~2x here.
    sum128, max128 = pl.pallas_call(
        pool,
        out_shape=(jax.ShapeDtypeStruct((B, C, _LANE), jnp.float32),
                   jax.ShapeDtypeStruct((B, C, _LANE), jnp.float32)),
        grid_spec=pltpu.PrefetchScalarGridSpec(
            num_scalar_prefetch=0,
            grid=(B, n_t),
            in_specs=[pl.BlockSpec((1, C, tp), lambda b, t: (b, 0, t))],
            out_specs=[pl.BlockSpec((1, C, _LANE), lambda b, t: (b, 0, 0)),
                       pl.BlockSpec((1, C, _LANE), lambda b, t: (b, 0, 0))],
        ),
        compiler_params=pltpu.CompilerParams(
            dimension_semantics=("parallel", "arbitrary"),
            vmem_limit_bytes=_VMEM_LIMIT),
    )(x)

    # Tiny per-batch MLP on B x C floats: plain XLA by design.
    avg = jnp.sum(sum128, axis=-1) / float(HW)               # (B, C)
    mx = jnp.max(max128, axis=-1)                            # (B, C)

    def fc(v):
        h = jnp.maximum(v @ params["w1"] + params["b1"], 0.0)
        return jax.nn.sigmoid(h @ params["w2"] + params["b2"])

    w_att = fc(avg) + fc(mx)                                 # (B, C)
    # Fold channel attention into the conv weight (review item #1).
    wc_eff = params["wc"][None, :, :] * w_att[:, None, :]    # (B, C, C)

    # Phase B: 1x1 conv, tiled over HW, fully parallel grid.
    tc = _pick_hw_tile(HW, C)
    out = pl.pallas_call(
        _conv1x1_kernel,
        out_shape=jax.ShapeDtypeStruct((B, C, HW), jnp.float32),
        grid_spec=pltpu.PrefetchScalarGridSpec(
            num_scalar_prefetch=0,
            grid=(B, pl.cdiv(HW, tc)),
            in_specs=[
                pl.BlockSpec((1, C, tc), lambda b, t: (b, 0, t)),   # x tile
                pl.BlockSpec((1, C, C), lambda b, t: (b, 0, 0)),    # wc_eff[b]
                pl.BlockSpec((C, 1), lambda b, t: (0, 0)),          # bias
            ],
            out_specs=pl.BlockSpec((1, C, tc), lambda b, t: (b, 0, t)),
        ),
        compiler_params=pltpu.CompilerParams(
            dimension_semantics=("parallel", "parallel"),
            vmem_limit_bytes=_VMEM_LIMIT),
    )(x, wc_eff, params["bc"].reshape(C, 1))

    return out.reshape(B, C, H, W)


def make_params(key, channels, reduction=16):
    hidden = channels // reduction
    assert hidden >= 1
    k1, k2, k3, k4, k5, k6 = jax.random.split(key, 6)
    return {
        # fc layers stored for right-multiplication: v @ W
        "w1": jax.random.normal(k1, (channels, hidden), jnp.float32) * 0.1,
        "b1": jax.random.normal(k2, (hidden,), jnp.float32) * 0.1,
        "w2": jax.random.normal(k3, (hidden, channels), jnp.float32) * 0.1,
        "b2": jax.random.normal(k4, (channels,), jnp.float32) * 0.1,
        # 1x1 conv in PyTorch layout (C_out, C_in) and bias (C_out,)
        "wc": jax.random.normal(k5, (channels, channels), jnp.float32) * 0.1,
        "bc": jax.random.normal(k6, (channels,), jnp.float32) * 0.1,
    }


def _reference(x_nchw, p):
    # Pure-JAX reference mirroring the PyTorch forward (NCHW semantics).
    # Note: sigmoid is applied per FC branch and then summed, exactly as in
    # the PyTorch ChannelAttention (fc = Linear-ReLU-Linear-Sigmoid applied
    # separately to avg and max pooled vectors).
    hp = jax.lax.Precision.HIGHEST
    avg = jnp.mean(x_nchw, axis=(2, 3))     # AdaptiveAvgPool2d(1).squeeze()
    mx = jnp.max(x_nchw, axis=(2, 3))       # AdaptiveMaxPool2d(1).squeeze()

    def fc(v):
        h = jnp.maximum(jnp.dot(v, p["w1"], precision=hp) + p["b1"], 0.0)
        return jax.nn.sigmoid(jnp.dot(h, p["w2"], precision=hp) + p["b2"])

    w = fc(avg) + fc(mx)                                     # (B, C)
    scaled = x_nchw * w[:, :, None, None]
    y = jnp.einsum("oi,bihw->bohw", p["wc"], scaled, precision=hp)
    return y + p["bc"][None, :, None, None]


if __name__ == "__main__":
    key = jax.random.PRNGKey(0)
    kx, kp, kx2 = jax.random.split(key, 3)

    # --- Test 1: fused single-pass path (small per-batch slab) ---------------
    B, C, H, W = 2, 32, 16, 16      # channels=32 -> hidden = channels // 16 = 2
    x = jax.random.normal(kx, (B, C, H, W), jnp.float32)
    params = make_params(kp, C, reduction=16)

    out = jax.block_until_ready(attention_forward(x, params))
    ref = _reference(x, params)
    assert out.shape == (B, C, H, W)
    assert jnp.allclose(out, ref, atol=1e-3, rtol=1e-3), "fused path mismatch"

    # --- Test 2: two-phase tiled path (forced), multi-tile + masked tail -----
    B2, C2, H2, W2 = 1, 32, 48, 48  # HW = 2304: 2 tiles of 2048 lanes + tail
    x2 = jax.random.normal(kx2, (B2, C2, H2, W2), jnp.float32)
    out2 = jax.block_until_ready(
        attention_forward(x2, params, fused_slab_bytes=0))
    ref2 = _reference(x2, params)
    assert out2.shape == (B2, C2, H2, W2)
    assert jnp.allclose(out2, ref2, atol=1e-3, rtol=1e-3), "tiled path mismatch"

    print("KERNEL_OK")
</pallas_src>

<mosaic_0001>
module attributes {stable_mosaic.version = 11 : i64} {
  func.func @_fused_kernel(%arg0: i32, %arg1: memref<1x32x256xf32, #tpu.memory_space<vmem>>, %arg2: memref<32x2xf32, #tpu.memory_space<vmem>>, %arg3: memref<1x2xf32, #tpu.memory_space<vmem>>, %arg4: memref<32x2xf32, #tpu.memory_space<vmem>>, %arg5: memref<32x1xf32, #tpu.memory_space<vmem>>, %arg6: memref<32x32xf32, #tpu.memory_space<vmem>>, %arg7: memref<32x1xf32, #tpu.memory_space<vmem>>, %arg8: memref<1x32x256xf32, #tpu.memory_space<vmem>>) attributes {dimension_semantics = [#tpu.dimension_semantics<parallel>], iteration_bounds = array<i64: 2>, scalar_prefetch = 0 : i64, scratch_operands = 0 : i64, tpu.core_type = #tpu.core_type<tc>, window_params = [{transform_indices = @transform_0, window_bounds = array<i64: 1, 32, 256>}, {pipeline_mode = #tpu.pipeline_mode<synchronous>, transform_indices = @transform_1, window_bounds = array<i64: 32, 2>}, {pipeline_mode = #tpu.pipeline_mode<synchronous>, transform_indices = @transform_2, window_bounds = array<i64: 1, 2>}, {pipeline_mode = #tpu.pipeline_mode<synchronous>, transform_indices = @transform_3, window_bounds = array<i64: 32, 2>}, {pipeline_mode = #tpu.pipeline_mode<synchronous>, transform_indices = @transform_4, window_bounds = array<i64: 32, 1>}, {pipeline_mode = #tpu.pipeline_mode<synchronous>, transform_indices = @transform_5, window_bounds = array<i64: 32, 32>}, {pipeline_mode = #tpu.pipeline_mode<synchronous>, transform_indices = @transform_6, window_bounds = array<i64: 32, 1>}, {transform_indices = @transform_7, window_bounds = array<i64: 1, 32, 256>}]} {
    %c0 = arith.constant 0 : index
    %c0_0 = arith.constant 0 : index
    %c0_1 = arith.constant 0 : index
    %0 = vector.load %arg1[%c0, %c0_0, %c0_1] : memref<1x32x256xf32, #tpu.memory_space<vmem>>, vector<1x32x256xf32>
    %1 = vector.shape_cast %0 : vector<1x32x256xf32> to vector<32x256xf32>
    %cst = arith.constant dense<0.000000e+00> : vector<32xf32>
    %2 = vector.multi_reduction <add>, %1, %cst [1] : vector<32x256xf32> to vector<32xf32>
    %3 = vector.shape_cast %2 : vector<32xf32> to vector<32x1xf32>
    %cst_2 = arith.constant 3.906250e-03 : f32
    %4 = vector.broadcast %cst_2 : f32 to vector<32x1xf32>
    %5 = arith.mulf %3, %4 : vector<32x1xf32>
    %cst_3 = arith.constant dense<0xFF800000> : vector<32xf32>
    %6 = vector.multi_reduction <maximumf>, %1, %cst_3 [1] : vector<32x256xf32> to vector<32xf32>
    %7 = vector.shape_cast %6 : vector<32xf32> to vector<32x1xf32>
    %c0_4 = arith.constant 0 : index
    %c0_5 = arith.constant 0 : index
    %8 = vector.load %arg2[%c0_4, %c0_5] : memref<32x2xf32, #tpu.memory_space<vmem>>, vector<32x2xf32>
    %c0_6 = arith.constant 0 : index
    %c0_7 = arith.constant 0 : index
    %9 = vector.load %arg3[%c0_6, %c0_7] : memref<1x2xf32, #tpu.memory_space<vmem>>, vector<1x2xf32>
    %c0_8 = arith.constant 0 : index
    %c0_9 = arith.constant 0 : index
    %10 = vector.load %arg4[%c0_8, %c0_9] : memref<32x2xf32, #tpu.memory_space<vmem>>, vector<32x2xf32>
    %c0_10 = arith.constant 0 : index
    %c0_11 = arith.constant 0 : index
    %11 = vector.load %arg5[%c0_10, %c0_11] : memref<32x1xf32, #tpu.memory_space<vmem>>, vector<32x1xf32>
    %12 = vector.broadcast %5 : vector<32x1xf32> to vector<32x2xf32>
    %13 = arith.mulf %8, %12 : vector<32x2xf32>
    %cst_12 = arith.constant dense<0.000000e+00> : vector<2xf32>
    %14 = vector.multi_reduction <add>, %13, %cst_12 [0] : vector<32x2xf32> to vector<2xf32>
    %15 = vector.shape_cast %14 : vector<2xf32> to vector<1x2xf32>
    %16 = arith.addf %15, %9 : vector<1x2xf32>
    %cst_13 = arith.constant 0.000000e+00 : f32
    %17 = vector.broadcast %cst_13 : f32 to vector<1x2xf32>
    %18 = arith.maximumf %16, %17 : vector<1x2xf32>
    %19 = vector.broadcast %18 : vector<1x2xf32> to vector<32x2xf32>
    %20 = arith.mulf %10, %19 : vector<32x2xf32>
    %cst_14 = arith.constant dense<0.000000e+00> : vector<32xf32>
    %21 = vector.multi_reduction <add>, %20, %cst_14 [1] : vector<32x2xf32> to vector<32xf32>
    %22 = vector.shape_cast %21 : vector<32xf32> to vector<32x1xf32>
    %23 = arith.addf %22, %11 : vector<32x1xf32>
    %24 = arith.negf %23 : vector<32x1xf32>
    %25 = math.exp %24 : vector<32x1xf32>
    %cst_15 = arith.constant 1.000000e+00 : f32
    %26 = vector.broadcast %cst_15 : f32 to vector<32x1xf32>
    %27 = arith.addf %26, %25 : vector<32x1xf32>
    %28 = arith.divf %26, %27 : vector<32x1xf32>
    %29 = vector.broadcast %7 : vector<32x1xf32> to vector<32x2xf32>
    %30 = arith.mulf %8, %29 : vector<32x2xf32>
    %cst_16 = arith.constant dense<0.000000e+00> : vector<2xf32>
    %31 = vector.multi_reduction <add>, %30, %cst_16 [0] : vector<32x2xf32> to vector<2xf32>
    %32 = vector.shape_cast %31 : vector<2xf32> to vector<1x2xf32>
    %33 = arith.addf %32, %9 : vector<1x2xf32>
    %cst_17 = arith.constant 0.000000e+00 : f32
    %34 = vector.broadcast %cst_17 : f32 to vector<1x2xf32>
    %35 = arith.maximumf %33, %34 : vector<1x2xf32>
    %36 = vector.broadcast %35 : vector<1x2xf32> to vector<32x2xf32>
    %37 = arith.mulf %10, %36 : vector<32x2xf32>
    %cst_18 = arith.constant dense<0.000000e+00> : vector<32xf32>
    %38 = vector.multi_reduction <add>, %37, %cst_18 [1] : vector<32x2xf32> to vector<32xf32>
    %39 = vector.shape_cast %38 : vector<32xf32> to vector<32x1xf32>
    %40 = arith.addf %39, %11 : vector<32x1xf32>
    %41 = arith.negf %40 : vector<32x1xf32>
    %42 = math.exp %41 : vector<32x1xf32>
    %cst_19 = arith.constant 1.000000e+00 : f32
    %43 = vector.broadcast %cst_19 : f32 to vector<32x1xf32>
    %44 = arith.addf %43, %42 : vector<32x1xf32>
    %45 = arith.divf %43, %44 : vector<32x1xf32>
    %46 = arith.addf %28, %45 : vector<32x1xf32>
    %c0_20 = arith.constant 0 : index
    %c0_21 = arith.constant 0 : index
    %47 = vector.load %arg6[%c0_20, %c0_21] : memref<32x32xf32, #tpu.memory_space<vmem>>, vector<32x32xf32>
    %48 = vector.broadcast %46 : vector<32x1xf32> to vector<32x256xf32>
    %49 = arith.mulf %1, %48 : vector<32x256xf32>
    %cst_22 = arith.constant dense<0.000000e+00> : vector<32x256xf32>
    %50 = tpu.matmul %47, %49, %cst_22 {dimension_numbers = #tpu.dot_dimension_numbers<[1], [0], [0], [1], [0, 0, 1, 1], [], []>} : vector<32x32xf32>, vector<32x256xf32>, vector<32x256xf32> -> vector<32x256xf32>
    %c0_23 = arith.constant 0 : index
    %c0_24 = arith.constant 0 : index
    %51 = vector.load %arg7[%c0_23, %c0_24] : memref<32x1xf32, #tpu.memory_space<vmem>>, vector<32x1xf32>
    %52 = vector.broadcast %51 : vector<32x1xf32> to vector<32x256xf32>
    %53 = arith.addf %50, %52 : vector<32x256xf32>
    %c0_25 = arith.constant 0 : index
    %c0_26 = arith.constant 0 : index
    %c0_27 = arith.constant 0 : index
    %54 = vector.load %arg8[%c0_25, %c0_26, %c0_27] : memref<1x32x256xf32, #tpu.memory_space<vmem>>, vector<1x32x256xf32>
    %55 = vector.shape_cast %54 : vector<1x32x256xf32> to vector<32x256xf32>
    %56 = vector.shape_cast %53 : vector<32x256xf32> to vector<1x32x256xf32>
    tpu.vector_store %arg8[%c0_25, %c0_26, %c0_27], %56 {strides = array<i32>} : memref<1x32x256xf32, #tpu.memory_space<vmem>>, vector<1x32x256xf32>,
    return
  }
  func.func @transform_0(%arg0: i32) -> (i32, i32, i32) {
    %c0_i32 = arith.constant 0 : i32
    %c0_i32_0 = arith.constant 0 : i32
    %c0_i32_1 = arith.constant 0 : i32
    return %arg0, %c0_i32, %c0_i32_0 : i32, i32, i32
  }
  func.func @transform_1(%arg0: i32) -> (i32, i32) {
    %c0_i32 = arith.constant 0 : i32
    %c0_i32_0 = arith.constant 0 : i32
    %c0_i32_1 = arith.constant 0 : i32
    return %c0_i32, %c0_i32_0 : i32, i32
  }
  func.func @transform_2(%arg0: i32) -> (i32, i32) {
    %c0_i32 = arith.constant 0 : i32
    %c0_i32_0 = arith.constant 0 : i32
    %c0_i32_1 = arith.constant 0 : i32
    return %c0_i32, %c0_i32_0 : i32, i32
  }
  func.func @transform_3(%arg0: i32) -> (i32, i32) {
    %c0_i32 = arith.constant 0 : i32
    %c0_i32_0 = arith.constant 0 : i32
    %c0_i32_1 = arith.constant 0 : i32
    return %c0_i32, %c0_i32_0 : i32, i32
  }
  func.func @transform_4(%arg0: i32) -> (i32, i32) {
    %c0_i32 = arith.constant 0 : i32
    %c0_i32_0 = arith.constant 0 : i32
    %c0_i32_1 = arith.constant 0 : i32
    return %c0_i32, %c0_i32_0 : i32, i32
  }
  func.func @transform_5(%arg0: i32) -> (i32, i32) {
    %c0_i32 = arith.constant 0 : i32
    %c0_i32_0 = arith.constant 0 : i32
    %c0_i32_1 = arith.constant 0 : i32
    return %c0_i32, %c0_i32_0 : i32, i32
  }
  func.func @transform_6(%arg0: i32) -> (i32, i32) {
    %c0_i32 = arith.constant 0 : i32
    %c0_i32_0 = arith.constant 0 : i32
    %c0_i32_1 = arith.constant 0 : i32
    return %c0_i32, %c0_i32_0 : i32, i32
  }
  func.func @transform_7(%arg0: i32) -> (i32, i32, i32) {
    %c0_i32 = arith.constant 0 : i32
    %c0_i32_0 = arith.constant 0 : i32
    %c0_i32_1 = arith.constant 0 : i32
    return %arg0, %c0_i32, %c0_i32_0 : i32, i32, i32
  }
}

</mosaic_0001>

<llo_original>
// kernel: tpu_custom_call.1
$region0: #{tpu_custom_call.1}
  #allocation0 [shape = 'u32[]', space=smem, size = 0x4, offset = 0x4, fixed_abs, tag = 'smem constant byte address 0x4 - core index']
  #allocation1 [shape = 'u32[72,128]{1,0:T(1,128)}', space=vmem, size = 0x9000, scoped, tag = 'internal scratch']
  %s0 = inlined_call_operand.hbm [shape: f32[2,32,256], index: 0, kind: input, shape index: {}]
  %s1 = inlined_call_operand.vmem [shape: f32[32,2], index: 1, kind: input, shape index: {}]
  %s2 = inlined_call_operand.vmem [shape: f32[1,2], index: 2, kind: input, shape index: {}]
  %s3 = inlined_call_operand.vmem [shape: f32[32,2], index: 3, kind: input, shape index: {}]
  %s4 = inlined_call_operand.vmem [shape: f32[32,1], index: 4, kind: input, shape index: {}]
  %s5 = inlined_call_operand.vmem [shape: f32[32,32], index: 5, kind: input, shape index: {}]
  %s6 = inlined_call_operand.vmem [shape: f32[32,1], index: 6, kind: input, shape index: {}]
  %s7 = inlined_call_operand.hbm [shape: f32[2,32,256], index: 7, kind: output, shape index: {}]
  %s8 = sld [smem:[#allocation0]]
  $region65: #{tpu_custom_call.1} parent=0
    _
  %s10 = ssub.s32 1, %s8
  %s11 = scalar_select 0, %s10, %s8
  $region1: #{tpu_custom_call.1} parent=0
    #allocation2 [shape = 'u8[65536]{0}', space=vmem, size = 0x10000, scoped, tag = 'input window, operand 0']
    #allocation3 [shape = 's32[2]{0}', space=sflag, size = 0x8, scoped, tag = 'scoped memory for tpu_custom_call.1']
    #allocation4 [shape = 's32[2]{0}', space=sflag, size = 0x8, scoped, tag = 'scoped memory for tpu_custom_call.1']
    #allocation5 [shape = 'u8[65536]{0}', space=vmem, size = 0x10000, scoped, tag = 'output window, operand 0']
    %12 = vsyncpa [#allocation3], 0
    %s13 = scalar_lea.sflag [#allocation3], 1
    %14 = vsyncpa %s13, 0
    %15 = vsyncpa [#allocation4], 0
    %s16 = scalar_lea.sflag [#allocation4], 1
    %17 = vsyncpa %s16, 0
    loop: start=0, step=1, limit=4
    $region2: #{tpu_custom_call.1} parent=1 // loop_pre_header
      _
    $region3: #{tpu_custom_call.1} parent=1 // loop_header
      %s19 = sphi 0, %s23
      %p20 = scmp.ge.s32.totalorder %s19, 4
      %s29 = sphi 0, %s31
      %s32 = sphi 0, %s29
      %s33 = sphi 0, %s32
      %s49 = sphi 0, %s33
      %s53 = sphi 0, %s53
      %s55 = sphi 0, %s53
      %s56 = sphi 0, %s55
      %s70 = sphi 0, %s56
      %s74 = sphi 0, %s74
      %s76 = sphi 0, %s74
      %s77 = sphi 0, %s76
      %s91 = sphi 0, %s77
      %s95 = sphi 0, %s95
      %s97 = sphi 0, %s95
      %s98 = sphi 0, %s97
      %s112 = sphi 0, %s98
      %s116 = sphi 0, %s116
      %s118 = sphi 0, %s116
      %s119 = sphi 0, %s118
      %s133 = sphi 0, %s119
      %s137 = sphi 0, %s137
      %s139 = sphi 0, %s137
      %s140 = sphi 0, %s139
      %s154 = sphi 0, %s140
      %s158 = sphi 0, %s158
      %s160 = sphi 0, %s158
      %s161 = sphi 0, %s160
      %s175 = sphi 0, %s161
      %s181 = sphi 0, %s183
      %s184 = sphi 0, %s181
      %s185 = sphi 0, %s184
      %s201 = sphi 0, %s185
    $region4: #{tpu_custom_call.1} parent=1 // loop_header_branch
      %22 = sbr.rel (%p20) target = $region8
    $region5: #{tpu_custom_call.1} parent=1 // loop_body
      %s24 = ssub.s32 %s19, 1
      %s25 = ssub.s32 %s19, 2
      %s26 = sadd.s32 %s19, 1
      %s27 = ssub.s32 %s19, %s26
      %p28 = scmp.eq.s32.totalorder %s27, 0
      %s30 = sadd.s32 %s29, 1
      %s31 = scalar_select %p28, %s29, %s30
      %p34 = pneg %p28
      %p35 = scmp.eq.s32.totalorder %s19, 1
      %p36 = por %p34, %p35
      %p37 = scmp.ne.s32.totalorder %s29, %s32
      %p38 = scmp.eq.s32.totalorder %s19, 0
      %p39 = por %p37, %p38
      %p40 = scmp.ne.s32.totalorder %s29, %s32
      %p41 = scmp.eq.s32.totalorder %s24, 1
      %p42 = por %p40, %p41
      %p43 = scmp.ne.s32.totalorder %s32, %s33
      %p44 = scmp.eq.s32.totalorder %s24, 0
      %p45 = por %p43, %p44
      %p46 = scmp.ne.s32.totalorder %s32, %s33
      %p47 = scmp.eq.s32.totalorder %s25, 1
      %p48 = por %p46, %p47
      %p50 = scmp.ne.s32.totalorder %s33, %s49
      %p51 = scmp.eq.s32.totalorder %s25, 0
      %p52 = por %p50, %p51
      %s54 = sadd.s32 %s53, 1
      %p57 = scmp.eq.s32.totalorder %s19, 1
      %p58 = scmp.ne.s32.totalorder %s53, %s55
      %p59 = scmp.eq.s32.totalorder %s19, 0
      %p60 = por %p58, %p59
      %p61 = scmp.ne.s32.totalorder %s53, %s55
      %p62 = scmp.eq.s32.totalorder %s24, 1
      %p63 = por %p61, %p62
      %p64 = scmp.ne.s32.totalorder %s55, %s56
      %p65 = scmp.eq.s32.totalorder %s24, 0
      %p66 = por %p64, %p65
      %p67 = scmp.ne.s32.totalorder %s55, %s56
      %p68 = scmp.eq.s32.totalorder %s25, 1
      %p69 = por %p67, %p68
      %p71 = scmp.ne.s32.totalorder %s56, %s70
      %p72 = scmp.eq.s32.totalorder %s25, 0
      %p73 = por %p71, %p72
      %s75 = sadd.s32 %s74, 1
      %p78 = scmp.eq.s32.totalorder %s19, 1
      %p79 = scmp.ne.s32.totalorder %s74, %s76
      %p80 = scmp.eq.s32.totalorder %s19, 0
      %p81 = por %p79, %p80
      %p82 = scmp.ne.s32.totalorder %s74, %s76
      %p83 = scmp.eq.s32.totalorder %s24, 1
      %p84 = por %p82, %p83
      %p85 = scmp.ne.s32.totalorder %s76, %s77
      %p86 = scmp.eq.s32.totalorder %s24, 0
      %p87 = por %p85, %p86
      %p88 = scmp.ne.s32.totalorder %s76, %s77
      %p89 = scmp.eq.s32.totalorder %s25, 1
      %p90 = por %p88, %p89
      %p92 = scmp.ne.s32.totalorder %s77, %s91
      %p93 = scmp.eq.s32.totalorder %s25, 0
      %p94 = por %p92, %p93
      %s96 = sadd.s32 %s95, 1
      %p99 = scmp.eq.s32.totalorder %s19, 1
      %p100 = scmp.ne.s32.totalorder %s95, %s97
      %p101 = scmp.eq.s32.totalorder %s19, 0
      %p102 = por %p100, %p101
      %p103 = scmp.ne.s32.totalorder %s95, %s97
      %p104 = scmp.eq.s32.totalorder %s24, 1
      %p105 = por %p103, %p104
      %p106 = scmp.ne.s32.totalorder %s97, %s98
      %p107 = scmp.eq.s32.totalorder %s24, 0
      %p108 = por %p106, %p107
      %p109 = scmp.ne.s32.totalorder %s97, %s98
      %p110 = scmp.eq.s32.totalorder %s25, 1
      %p111 = por %p109, %p110
      %p113 = scmp.ne.s32.totalorder %s98, %s112
      %p114 = scmp.eq.s32.totalorder %s25, 0
      %p115 = por %p113, %p114
      %s117 = sadd.s32 %s116, 1
      %p120 = scmp.eq.s32.totalorder %s19, 1
      %p121 = scmp.ne.s32.totalorder %s116, %s118
      %p122 = scmp.eq.s32.totalorder %s19, 0
      %p123 = por %p121, %p122
      %p124 = scmp.ne.s32.totalorder %s116, %s118
      %p125 = scmp.eq.s32.totalorder %s24, 1
      %p126 = por %p124, %p125
      %p127 = scmp.ne.s32.totalorder %s118, %s119
      %p128 = scmp.eq.s32.totalorder %s24, 0
      %p129 = por %p127, %p128
      %p130 = scmp.ne.s32.totalorder %s118, %s119
      %p131 = scmp.eq.s32.totalorder %s25, 1
      %p132 = por %p130, %p131
      %p134 = scmp.ne.s32.totalorder %s119, %s133
      %p135 = scmp.eq.s32.totalorder %s25, 0
      %p136 = por %p134, %p135
      %s138 = sadd.s32 %s137, 1
      %p141 = scmp.eq.s32.totalorder %s19, 1
      %p142 = scmp.ne.s32.totalorder %s137, %s139
      %p143 = scmp.eq.s32.totalorder %s19, 0
      %p144 = por %p142, %p143
      %p145 = scmp.ne.s32.totalorder %s137, %s139
      %p146 = scmp.eq.s32.totalorder %s24, 1
      %p147 = por %p145, %p146
      %p148 = scmp.ne.s32.totalorder %s139, %s140
      %p149 = scmp.eq.s32.totalorder %s24, 0
      %p150 = por %p148, %p149
      %p151 = scmp.ne.s32.totalorder %s139, %s140
      %p152 = scmp.eq.s32.totalorder %s25, 1
      %p153 = por %p151, %p152
      %p155 = scmp.ne.s32.totalorder %s140, %s154
      %p156 = scmp.eq.s32.totalorder %s25, 0
      %p157 = por %p155, %p156
      %s159 = sadd.s32 %s158, 1
      %p162 = scmp.eq.s32.totalorder %s19, 1
      %p163 = scmp.ne.s32.totalorder %s158, %s160
      %p164 = scmp.eq.s32.totalorder %s19, 0
      %p165 = por %p163, %p164
      %p166 = scmp.ne.s32.totalorder %s158, %s160
      %p167 = scmp.eq.s32.totalorder %s24, 1
      %p168 = por %p166, %p167
      %p169 = scmp.ne.s32.totalorder %s160, %s161
      %p170 = scmp.eq.s32.totalorder %s24, 0
      %p171 = por %p169, %p170
      %p172 = scmp.ne.s32.totalorder %s160, %s161
      %p173 = scmp.eq.s32.totalorder %s25, 1
      %p174 = por %p172, %p173
      %p176 = scmp.ne.s32.totalorder %s161, %s175
      %p177 = scmp.eq.s32.totalorder %s25, 0
      %p178 = por %p176, %p177
      %s179 = ssub.s32 %s19, %s26
      %p180 = scmp.eq.s32.totalorder %s179, 0
      %s182 = sadd.s32 %s181, 1
      %s183 = scalar_select %p180, %s181, %s182
      %p186 = pneg %p180
      %p187 = scmp.eq.s32.totalorder %s19, 1
      %p188 = por %p186, %p187
      %p189 = scmp.ne.s32.totalorder %s181, %s184
      %p190 = scmp.eq.s32.totalorder %s19, 0
      %p191 = por %p189, %p190
      %p192 = scmp.ne.s32.totalorder %s181, %s184
      %p193 = scmp.eq.s32.totalorder %s24, 1
      %p194 = por %p192, %p193
      %p195 = scmp.ne.s32.totalorder %s184, %s185
      %p196 = scmp.eq.s32.totalorder %s24, 0
      %p197 = por %p195, %p196
      %p198 = scmp.ne.s32.totalorder %s184, %s185
      %p199 = scmp.eq.s32.totalorder %s25, 1
      %p200 = por %p198, %p199
      %p202 = scmp.ne.s32.totalorder %s185, %s201
      %p203 = scmp.eq.s32.totalorder %s25, 0
      %p204 = por %p202, %p203
      %p205 = scmp.le.s32.totalorder 1, %s19
      %p206 = scmp.lt.s32.totalorder %s19, 3
      %p207 = pnand %p205, %p206
      %p208 = pneg %p207
      // Predicated region
      $region9: #{tpu_custom_call.1} parent=5 // pred_check
        _
      $region10: #{tpu_custom_call.1} parent=5 // pred_check_branch
        %210 = sbr.rel (%p207) target = $region12
      $region11: #{tpu_custom_call.1} parent=5 // pred_region
        %s211 = ssub.s32 %s19, 1
        // Predicated region
        $region13: #{tpu_custom_call.1} parent=11 // pred_check
          %p212 = pneg %p66
        $region14: #{tpu_custom_call.1} parent=11 // pred_check_branch
          %214 = sbr.rel (%p212) target = $region16
        $region15: #{tpu_custom_call.1} parent=11 // pred_region
          _
        $region16: #{tpu_custom_call.1} parent=11 // pred_fallthru
          _
        // Predicated region
        $region17: #{tpu_custom_call.1} parent=11 // pred_check
          %p215 = pneg %p87
        $region18: #{tpu_custom_call.1} parent=11 // pred_check_branch
          %217 = sbr.rel (%p215) target = $region20
        $region19: #{tpu_custom_call.1} parent=11 // pred_region
          _
        $region20: #{tpu_custom_call.1} parent=11 // pred_fallthru
          _
        // Predicated region
        $region21: #{tpu_custom_call.1} parent=11 // pred_check
          %p218 = pneg %p108
        $region22: #{tpu_custom_call.1} parent=11 // pred_check_branch
          %220 = sbr.rel (%p218) target = $region24
        $region23: #{tpu_custom_call.1} parent=11 // pred_region
          _
        $region24: #{tpu_custom_call.1} parent=11 // pred_fallthru
          _
        // Predicated region
        $region25: #{tpu_custom_call.1} parent=11 // pred_check
          %p221 = pneg %p129
        $region26: #{tpu_custom_call.1} parent=11 // pred_check_branch
          %223 = sbr.rel (%p221) target = $region28
        $region27: #{tpu_custom_call.1} parent=11 // pred_region
          _
        $region28: #{tpu_custom_call.1} parent=11 // pred_fallthru
          _
        // Predicated region
        $region29: #{tpu_custom_call.1} parent=11 // pred_check
          %p224 = pneg %p150
        $region30: #{tpu_custom_call.1} parent=11 // pred_check_branch
          %226 = sbr.rel (%p224) target = $region32
        $region31: #{tpu_custom_call.1} parent=11 // pred_region
          _
        $region32: #{tpu_custom_call.1} parent=11 // pred_fallthru
          _
        // Predicated region
        $region33: #{tpu_custom_call.1} parent=11 // pred_check
          %p227 = pneg %p171
        $region34: #{tpu_custom_call.1} parent=11 // pred_check_branch
          %229 = sbr.rel (%p227) target = $region36
        $region35: #{tpu_custom_call.1} parent=11 // pred_region
          _
        $region36: #{tpu_custom_call.1} parent=11 // pred_fallthru
          _
      $region12: #{tpu_custom_call.1} parent=5 // pred_fallthru
        _
      %p230 = scmp.lt.s32.totalorder %s19, 2
      // Predicated region
      $region37: #{tpu_custom_call.1} parent=5 // pred_check
        %p231 = pneg %p230
      $region38: #{tpu_custom_call.1} parent=5 // pred_check_branch
        %233 = sbr.rel (%p231) target = $region40
      $region39: #{tpu_custom_call.1} parent=5 // pred_region
        // Predicated region
        $region41: #{tpu_custom_call.1} parent=39 // pred_check
          %p234 = pneg %p39
        $region42: #{tpu_custom_call.1} parent=39 // pred_check_branch
          %236 = sbr.rel (%p234) target = $region44
        $region43: #{tpu_custom_call.1} parent=39 // pred_region
          %s237 = sand.u32 %s29, 1
          %s238 = scalar_lea.sflag [#allocation3], %s237
          %s239 = sand.u32 %s29, 1
          %s240 = smul.addr %s239, 64
          %s241 = scalar_lea.vmem [#allocation2], %s240
          %243 = vsyncadd %s238, 0
          %s244 = smul.addr %s19, 8
          %s245 = smul.addr %s244, 8
          %s246 = scalar_lea.hbm %s0, %s245
          %s247 = sshll.u32 %s246, 4
          %s248 = int_to_ptr.hbm [resolvable:$true] %s247
          %s249 = sshll.u32 %s241, 4
          %s250 = int_to_ptr.vmem [resolvable:$true] %s249
          %255 = dma.hbm_to_vmem [thread:$0]  %s248, 1024, %s250, %s238, 256, 256, 16
        $region44: #{tpu_custom_call.1} parent=39 // pred_fallthru
          _
      $region40: #{tpu_custom_call.1} parent=5 // pred_fallthru
        _
      %p256 = scmp.le.s32.totalorder 1, %s19
      %p257 = scmp.lt.s32.totalorder %s19, 3
      %p258 = pnand %p256, %p257
      %p259 = pneg %p258
      // Predicated region
      $region45: #{tpu_custom_call.1} parent=5 // pred_check
        _
      $region46: #{tpu_custom_call.1} parent=5 // pred_check_branch
        %261 = sbr.rel (%p258) target = $region48
      $region47: #{tpu_custom_call.1} parent=5 // pred_region
        %s262 = ssub.s32 %s19, 1
        %s263 = sand.u32 %s32, 1
        %s264 = scalar_lea.sflag [#allocation3], %s263
        %s265 = sand.u32 %s32, 1
        %s266 = smul.addr %s265, 64
        %s267 = scalar_lea.vmem [#allocation2], %s266
        // Predicated region
        $region49: #{tpu_custom_call.1} parent=47 // pred_check
          %p268 = pneg %p45
        $region50: #{tpu_custom_call.1} parent=47 // pred_check_branch
          %270 = sbr.rel (%p268) target = $region52
        $region51: #{tpu_custom_call.1} parent=47 // pred_region
          %272 = dma.done %s264, 1024
        $region52: #{tpu_custom_call.1} parent=47 // pred_fallthru
          _
        %s273 = sand.u32 %s32, 1
        %s274 = scalar_lea.sflag [#allocation3], %s273
        %s275 = sand.u32 %s32, 1
        %s276 = smul.addr %s275, 64
        %s277 = scalar_lea.vmem [#allocation2], %s276
        %p278 = pneg %p45
        %p279 = pneg %p42
        %p280 = pneg %p66
        %p281 = pneg %p63
        %p282 = pneg %p87
        %p283 = pneg %p84
        %p284 = pneg %p108
        %p285 = pneg %p105
        %p286 = pneg %p129
        %p287 = pneg %p126
        %p288 = pneg %p150
        %p289 = pneg %p147
        %p290 = pneg %p171
        %p291 = pneg %p168
        %p292 = pneg %p197
        %p293 = pneg %p194
        %s294 = sand.u32 %s184, 1
        %s295 = scalar_lea.sflag [#allocation4], %s294
        %s296 = sand.u32 %s184, 1
        %s297 = smul.addr %s296, 64
        %s298 = scalar_lea.vmem [#allocation5], %s297
        %v299 = vld [vmem:[%s267] sm:$0xff]
        %v300 = vld [vmem:[%s267 + $0x8] sm:$0xff]
        %v301 = vld [vmem:[%s267 + $0x10] sm:$0xff]
        %v302 = vld [vmem:[%s267 + $0x18] sm:$0xff]
        %v303 = vld [vmem:[%s267 + $0x20] sm:$0xff]
        %v304 = vld [vmem:[%s267 + $0x28] sm:$0xff]
        %v305 = vld [vmem:[%s267 + $0x30] sm:$0xff]
        %v306 = vld [vmem:[%s267 + $0x38] sm:$0xff]
        %v307 = vadd.f32 %v299, %v300
        %308 = vadd.xlane.f32.xlu0 %v307
        %v309 = vpop.xlane.xlu0 %308
        %v310 = vadd.f32 %v301, %v302
        %311 = vadd.xlane.f32.xlu0 %v310
        %v312 = vpop.xlane.xlu0 %311
        %v313 = vadd.f32 %v303, %v304
        %314 = vadd.xlane.f32.xlu0 %v313
        %v315 = vpop.xlane.xlu0 %314
        %v316 = vadd.f32 %v305, %v306
        %317 = vadd.xlane.f32.xlu0 %v316
        %v318 = vpop.xlane.xlu0 %317
        %v319 = vmul.f32 %v309, 0.00390625
        %v320 = vmul.f32 %v312, 0.00390625
        %v321 = vmul.f32 %v315, 0.00390625
        %v322 = vmul.f32 %v318, 0.00390625
        %v323 = vmax.f32 %v299, %v300
        %324 = vmax.xlane.f32.xlu0 %v323
        %v325 = vpop.xlane.xlu0 %324
        %v326 = vmax.f32 %v301, %v302
        %327 = vmax.xlane.f32.xlu0 %v326
        %v328 = vpop.xlane.xlu0 %327
        %v329 = vmax.f32 %v303, %v304
        %330 = vmax.xlane.f32.xlu0 %v329
        %v331 = vpop.xlane.xlu0 %330
        %v332 = vmax.f32 %v305, %v306
        %333 = vmax.xlane.f32.xlu0 %v332
        %v334 = vpop.xlane.xlu0 %333
        %v335 = vld [vmem:[%s1] sm:$0xff]
        %v336 = vld [vmem:[%s1 + $0x8] sm:$0xff]
        %v337 = vld [vmem:[%s1 + $0x10] sm:$0xff]
        %v338 = vld [vmem:[%s1 + $0x18] sm:$0xff]
        %v339 = vld [vmem:[%s2] sm:$0x1]
        %v340 = vld [vmem:[%s3] sm:$0xff]
        %v341 = vld [vmem:[%s3 + $0x8] sm:$0xff]
        %v342 = vld [vmem:[%s3 + $0x10] sm:$0xff]
        %v343 = vld [vmem:[%s3 + $0x18] sm:$0xff]
        %v344 = vld [vmem:[%s4] sm:$0xff]
        %v345 = vld [vmem:[%s4 + $0x8] sm:$0xff]
        %v346 = vld [vmem:[%s4 + $0x10] sm:$0xff]
        %v347 = vld [vmem:[%s4 + $0x18] sm:$0xff]
        %v348 = vmul.f32 %v335, %v319
        %v349 = vmul.f32 %v336, %v320
        %v350 = vmul.f32 %v337, %v321
        %v351 = vmul.f32 %v338, %v322
        %vm352 = vcmask 15360
        %v353 = vsel %vm352, %v348, 0.0
        %v354 = vsel %vm352, %v349, 0.0
        %v355 = vadd.f32 %v353, %v354
        %v356 = vsel %vm352, %v350, 0.0
        %v357 = vadd.f32 %v355, %v356
        %v358 = vsel %vm352, %v351, 0.0
        %v359 = vadd.f32 %v357, %v358
        %v360 = vrot.slane %v359, 4
        %v361 = vadd.f32 %v359, %v360
        %v362 = vrot.slane %v361, 2
        %v363 = vadd.f32 %v361, %v362
        %v364 = vrot.slane %v363, 1
        %v365 = vadd.f32 %v363, %v364
        %v366 = vadd.f32 %v365, %v339
        %v367 = vmax.f32 %v366, 0.0
        %v368 = vperm.slane %v367, 0
        %v369 = vmul.f32 %v340, %v368
        %v370 = vmul.f32 %v341, %v368
        %v371 = vmul.f32 %v342, %v368
        %v372 = vmul.f32 %v343, %v368
        %v373 = vsel %vm352, %v369, 0.0
        %374 = vadd.xlane.f32.xlu0 %v373
        %v375 = vpop.xlane.xlu0 %374
        %v376 = vsel %vm352, %v370, 0.0
        %377 = vadd.xlane.f32.xlu0 %v376
        %v378 = vpop.xlane.xlu0 %377
        %v379 = vsel %vm352, %v371, 0.0
        %380 = vadd.xlane.f32.xlu0 %v379
        %v381 = vpop.xlane.xlu0 %380
        %v382 = vsel %vm352, %v372, 0.0
        %383 = vadd.xlane.f32.xlu0 %v382
        %v384 = vpop.xlane.xlu0 %383
        %v385 = vadd.f32 %v375, %v344
        %v386 = vadd.f32 %v378, %v345
        %v387 = vadd.f32 %v381, %v346
        %v388 = vadd.f32 %v384, %v347
        %v389 = vxor.u32 %v385, 2147483648
        %v390 = vxor.u32 %v386, 2147483648
        %v391 = vxor.u32 %v387, 2147483648
        %v392 = vxor.u32 %v388, 2147483648
        %v393 = vmul.f32 %v389, 1.442695
        %v394 = vpow.pop %v393
        %v395 = vmul.f32 %v390, 1.442695
        %v396 = vpow.pop %v395
        %v397 = vmul.f32 %v391, 1.442695
        %v398 = vpow.pop %v397
        %v399 = vmul.f32 %v392, 1.442695
        %v400 = vpow.pop %v399
        %v401 = vadd.f32 %v394, 1.0
        %v402 = vadd.f32 %v396, 1.0
        %v403 = vadd.f32 %v398, 1.0
        %v404 = vadd.f32 %v400, 1.0
        %v405 = vrcp.pop %v401
        %v406 = vmul.f32 %v401, %v405
        %v407 = vsub.f32 1.0, %v406
        %v408 = vmul.f32 %v405, %v407
        %v409 = vadd.f32 %v405, %v408
        %vm410 = vweird.f32 %v401
        %vm411 = vweird.f32 %v405
        %vm412 = vmor %vm410, %vm411
        %v413 = vsel %vm412, %v405, %v409
        %v414 = vand.u32 2147483647, %v401
        %vm415 = vcmp.eq.f32.partialorder %v414, 8.507059e+37
        %v416 = vand.u32 %v401, 2147483648
        %v417 = vor.u32 1.1754944e-38, %v416
        %v418 = vsel %vm415, %v417, %v413
        %v419 = vmul.f32 1.0, %v418
        %v420 = vrcp.pop %v402
        %v421 = vmul.f32 %v402, %v420
        %v422 = vsub.f32 1.0, %v421
        %v423 = vmul.f32 %v420, %v422
        %v424 = vadd.f32 %v420, %v423
        %vm425 = vweird.f32 %v402
        %vm426 = vweird.f32 %v420
        %vm427 = vmor %vm425, %vm426
        %v428 = vsel %vm427, %v420, %v424
        %v429 = vand.u32 2147483647, %v402
        %vm430 = vcmp.eq.f32.partialorder %v429, 8.507059e+37
        %v431 = vand.u32 %v402, 2147483648
        %v432 = vor.u32 1.1754944e-38, %v431
        %v433 = vsel %vm430, %v432, %v428
        %v434 = vmul.f32 1.0, %v433
        %v435 = vrcp.pop %v403
        %v436 = vmul.f32 %v403, %v435
        %v437 = vsub.f32 1.0, %v436
        %v438 = vmul.f32 %v435, %v437
        %v439 = vadd.f32 %v435, %v438
        %vm440 = vweird.f32 %v403
        %vm441 = vweird.f32 %v435
        %vm442 = vmor %vm440, %vm441
        %v443 = vsel %vm442, %v435, %v439
        %v444 = vand.u32 2147483647, %v403
        %vm445 = vcmp.eq.f32.partialorder %v444, 8.507059e+37
        %v446 = vand.u32 %v403, 2147483648
        %v447 = vor.u32 1.1754944e-38, %v446
        %v448 = vsel %vm445, %v447, %v443
        %v449 = vmul.f32 1.0, %v448
        %v450 = vrcp.pop %v404
        %v451 = vmul.f32 %v404, %v450
        %v452 = vsub.f32 1.0, %v451
        %v453 = vmul.f32 %v450, %v452
        %v454 = vadd.f32 %v450, %v453
        %vm455 = vweird.f32 %v404
        %vm456 = vweird.f32 %v450
        %vm457 = vmor %vm455, %vm456
        %v458 = vsel %vm457, %v450, %v454
        %v459 = vand.u32 2147483647, %v404
        %vm460 = vcmp.eq.f32.partialorder %v459, 8.507059e+37
        %v461 = vand.u32 %v404, 2147483648
        %v462 = vor.u32 1.1754944e-38, %v461
        %v463 = vsel %vm460, %v462, %v458
        %v464 = vmul.f32 1.0, %v463
        %v465 = vmul.f32 %v335, %v325
        %v466 = vmul.f32 %v336, %v328
        %v467 = vmul.f32 %v337, %v331
        %v468 = vmul.f32 %v338, %v334
        %v469 = vsel %vm352, %v465, 0.0
        %v470 = vsel %vm352, %v466, 0.0
        %v471 = vadd.f32 %v469, %v470
        %v472 = vsel %vm352, %v467, 0.0
        %v473 = vadd.f32 %v471, %v472
        %v474 = vsel %vm352, %v468, 0.0
        %v475 = vadd.f32 %v473, %v474
        %v476 = vrot.slane %v475, 4
        %v477 = vadd.f32 %v475, %v476
        %v478 = vrot.slane %v477, 2
        %v479 = vadd.f32 %v477, %v478
        %v480 = vrot.slane %v479, 1
        %v481 = vadd.f32 %v479, %v480
        %v482 = vadd.f32 %v481, %v339
        %v483 = vmax.f32 %v482, 0.0
        %v484 = vperm.slane %v483, 0
        %v485 = vmul.f32 %v340, %v484
        %v486 = vmul.f32 %v341, %v484
        %v487 = vmul.f32 %v342, %v484
        %v488 = vmul.f32 %v343, %v484
        %v489 = vsel %vm352, %v485, 0.0
        %490 = vadd.xlane.f32.xlu0 %v489
        %v491 = vpop.xlane.xlu0 %490
        %v492 = vsel %vm352, %v486, 0.0
        %493 = vadd.xlane.f32.xlu0 %v492
        %v494 = vpop.xlane.xlu0 %493
        %v495 = vsel %vm352, %v487, 0.0
        %496 = vadd.xlane.f32.xlu0 %v495
        %v497 = vpop.xlane.xlu0 %496
        %v498 = vsel %vm352, %v488, 0.0
        %499 = vadd.xlane.f32.xlu0 %v498
        %v500 = vpop.xlane.xlu0 %499
        %v501 = vadd.f32 %v491, %v344
        %v502 = vadd.f32 %v494, %v345
        %v503 = vadd.f32 %v497, %v346
        %v504 = vadd.f32 %v500, %v347
        %v505 = vxor.u32 %v501, 2147483648
        %v506 = vxor.u32 %v502, 2147483648
        %v507 = vxor.u32 %v503, 2147483648
        %v508 = vxor.u32 %v504, 2147483648
        %v509 = vmul.f32 %v505, 1.442695
        %v510 = vpow.pop %v509
        %v511 = vmul.f32 %v506, 1.442695
        %v512 = vpow.pop %v511
        %v513 = vmul.f32 %v507, 1.442695
        %v514 = vpow.pop %v513
        %v515 = vmul.f32 %v508, 1.442695
        %v516 = vpow.pop %v515
        %v517 = vadd.f32 %v510, 1.0
        %v518 = vadd.f32 %v512, 1.0
        %v519 = vadd.f32 %v514, 1.0
        %v520 = vadd.f32 %v516, 1.0
        %v521 = vrcp.pop %v517
        %v522 = vmul.f32 %v517, %v521
        %v523 = vsub.f32 1.0, %v522
        %v524 = vmul.f32 %v521, %v523
        %v525 = vadd.f32 %v521, %v524
        %vm526 = vweird.f32 %v517
        %vm527 = vweird.f32 %v521
        %vm528 = vmor %vm526, %vm527
        %v529 = vsel %vm528, %v521, %v525
        %v530 = vand.u32 2147483647, %v517
        %vm531 = vcmp.eq.f32.partialorder %v530, 8.507059e+37
        %v532 = vand.u32 %v517, 2147483648
        %v533 = vor.u32 1.1754944e-38, %v532
        %v534 = vsel %vm531, %v533, %v529
        %v535 = vmul.f32 1.0, %v534
        %v536 = vrcp.pop %v518
        %v537 = vmul.f32 %v518, %v536
        %v538 = vsub.f32 1.0, %v537
        %v539 = vmul.f32 %v536, %v538
        %v540 = vadd.f32 %v536, %v539
        %vm541 = vweird.f32 %v518
        %vm542 = vweird.f32 %v536
        %vm543 = vmor %vm541, %vm542
        %v544 = vsel %vm543, %v536, %v540
        %v545 = vand.u32 2147483647, %v518
        %vm546 = vcmp.eq.f32.partialorder %v545, 8.507059e+37
        %v547 = vand.u32 %v518, 2147483648
        %v548 = vor.u32 1.1754944e-38, %v547
        %v549 = vsel %vm546, %v548, %v544
        %v550 = vmul.f32 1.0, %v549
        %v551 = vrcp.pop %v519
        %v552 = vmul.f32 %v519, %v551
        %v553 = vsub.f32 1.0, %v552
        %v554 = vmul.f32 %v551, %v553
        %v555 = vadd.f32 %v551, %v554
        %vm556 = vweird.f32 %v519
        %vm557 = vweird.f32 %v551
        %vm558 = vmor %vm556, %vm557
        %v559 = vsel %vm558, %v551, %v555
        %v560 = vand.u32 2147483647, %v519
        %vm561 = vcmp.eq.f32.partialorder %v560, 8.507059e+37
        %v562 = vand.u32 %v519, 2147483648
        %v563 = vor.u32 1.1754944e-38, %v562
        %v564 = vsel %vm561, %v563, %v559
        %v565 = vmul.f32 1.0, %v564
        %v566 = vrcp.pop %v520
        %v567 = vmul.f32 %v520, %v566
        %v568 = vsub.f32 1.0, %v567
        %v569 = vmul.f32 %v566, %v568
        %v570 = vadd.f32 %v566, %v569
        %vm571 = vweird.f32 %v520
        %vm572 = vweird.f32 %v566
        %vm573 = vmor %vm571, %vm572
        %v574 = vsel %vm573, %v566, %v570
        %v575 = vand.u32 2147483647, %v520
        %vm576 = vcmp.eq.f32.partialorder %v575, 8.507059e+37
        %v577 = vand.u32 %v520, 2147483648
        %v578 = vor.u32 1.1754944e-38, %v577
        %v579 = vsel %vm576, %v578, %v574
        %v580 = vmul.f32 1.0, %v579
        %v581 = vadd.f32 %v419, %v535
        %v582 = vadd.f32 %v434, %v550
        %v583 = vadd.f32 %v449, %v565
        %v584 = vadd.f32 %v464, %v580
        %v585 = vld [vmem:[%s5] sm:$0xff]
        %v586 = vld [vmem:[%s5 + $0x8] sm:$0xff]
        %v587 = vld [vmem:[%s5 + $0x10] sm:$0xff]
        %v588 = vld [vmem:[%s5 + $0x18] sm:$0xff]
        %590 = vset.pattern.permute.xlu0 0
        %591 = vperm.xlu0 %590, %v581
        %v592 = vpop.permute.xlu0 %591
        %595 = vset.pattern.permute.xlu0 0
        %596 = vperm.xlu0 %595, %v582
        %v597 = vpop.permute.xlu0 %596
        %600 = vset.pattern.permute.xlu0 0
        %601 = vperm.xlu0 %600, %v583
        %v602 = vpop.permute.xlu0 %601
        %605 = vset.pattern.permute.xlu0 0
        %606 = vperm.xlu0 %605, %v584
        %v607 = vpop.permute.xlu0 %606
        %v609 = vmul.f32 %v299, %v592
        %v610 = vmul.f32 %v300, %v592
        %v611 = vmul.f32 %v301, %v597
        %v612 = vmul.f32 %v302, %v597
        %v613 = vmul.f32 %v303, %v602
        %v614 = vmul.f32 %v304, %v602
        %v615 = vmul.f32 %v305, %v607
        %v616 = vmul.f32 %v306, %v607
        %v617 = vld [vmem:[%s6] sm:$0xff]
        %v618 = vld [vmem:[%s6 + $0x8] sm:$0xff]
        %v619 = vld [vmem:[%s6 + $0x10] sm:$0xff]
        %v620 = vld [vmem:[%s6 + $0x18] sm:$0xff]
        %622 = vset.pattern.permute.xlu0 0
        %623 = vperm.xlu0 %622, %v617
        %v624 = vpop.permute.xlu0 %623
        %627 = vset.pattern.permute.xlu0 0
        %628 = vperm.xlu0 %627, %v618
        %v629 = vpop.permute.xlu0 %628
        %632 = vset.pattern.permute.xlu0 0
        %633 = vperm.xlu0 %632, %v619
        %v634 = vpop.permute.xlu0 %633
        %637 = vset.pattern.permute.xlu0 0
        %638 = vperm.xlu0 %637, %v620
        %v639 = vpop.permute.xlu0 %638
        %vm641 = vcmask 261120
        %v643 = vsel %vm641, %v585, 0
        %v646 = vsel %vm641, %v586, 0
        %v649 = vsel %vm641, %v587, 0
        %v652 = vsel %vm641, %v588, 0
        %654 = vmatpush.msra.mxu0 0.0
        %655 = vmatpush.msra.mxu0 0.0
        %656 = vmatpush.msra.mxu0 0.0
        %657 = vmatpush.msra.mxu0 0.0
        %658 = vmatpush.msra.mxu0 0.0
        %659 = vmatpush.msra.mxu0 0.0
        %660 = vmatpush.msra.mxu0 0.0
        %661 = vmatpush.msra.mxu0 0.0
        %662 = vmatpush.msra.mxu0 0.0
        %663 = vmatpush.msra.mxu0 0.0
        %664 = vmatpush.msra.mxu0 0.0
        %665 = vmatpush.msra.mxu0 0.0
        %666 = vmatpush.msra.mxu0 %v615
        %667 = vmatpush.msra.mxu0 %v613
        %668 = vmatpush.msra.mxu0 %v611
        %669 = vmatpush.msra.mxu0 %v609
        %670 = vmatmul.f32.gmra.mxu0 %v643
        %v671 = vpop.f32.mrf.mxu0
        %v672 = vadd.f32 %v624, %v671
        %673 = vmatmul.f32.gmra.mxu0 %v646
        %v674 = vpop.f32.mrf.mxu0
        %v675 = vadd.f32 %v629, %v674
        %676 = vmatmul.f32.gmra.mxu0 %v649
        %v677 = vpop.f32.mrf.mxu0
        %v678 = vadd.f32 %v634, %v677
        %679 = vmatmul.f32.gmra.mxu0 %v652
        %v680 = vpop.f32.mrf.mxu0
        %v681 = vadd.f32 %v639, %v680
        %682 = vdwg.mxu0
        %683 = vmatpush.msra.mxu0 0.0
        %684 = vmatpush.msra.mxu0 0.0
        %685 = vmatpush.msra.mxu0 0.0
        %686 = vmatpush.msra.mxu0 0.0
        %687 = vmatpush.msra.mxu0 0.0
        %688 = vmatpush.msra.mxu0 0.0
        %689 = vmatpush.msra.mxu0 0.0
        %690 = vmatpush.msra.mxu0 0.0
        %691 = vmatpush.msra.mxu0 0.0
        %692 = vmatpush.msra.mxu0 0.0
        %693 = vmatpush.msra.mxu0 0.0
        %694 = vmatpush.msra.mxu0 0.0
        %695 = vmatpush.msra.mxu0 %v616
        %696 = vmatpush.msra.mxu0 %v614
        %697 = vmatpush.msra.mxu0 %v612
        %698 = vmatpush.msra.mxu0 %v610
        %699 = vmatmul.f32.gmra.mxu0 %v643
        %v700 = vpop.f32.mrf.mxu0
        %v701 = vadd.f32 %v624, %v700
        %702 = vmatmul.f32.gmra.mxu0 %v646
        %v703 = vpop.f32.mrf.mxu0
        %v704 = vadd.f32 %v629, %v703
        %705 = vmatmul.f32.gmra.mxu0 %v649
        %v706 = vpop.f32.mrf.mxu0
        %v707 = vadd.f32 %v634, %v706
        %708 = vmatmul.f32.gmra.mxu0 %v652
        %v709 = vpop.f32.mrf.mxu0
        %v710 = vadd.f32 %v639, %v709
        %711 = vdwg.mxu0
        %712 = vst [vmem:[%s298] sm:$0xff] %v672
        %713 = vst [vmem:[%s298 + $0x8] sm:$0xff] %v701
        %714 = vst [vmem:[%s298 + $0x10] sm:$0xff] %v675
        %715 = vst [vmem:[%s298 + $0x18] sm:$0xff] %v704
        %716 = vst [vmem:[%s298 + $0x20] sm:$0xff] %v678
        %717 = vst [vmem:[%s298 + $0x28] sm:$0xff] %v707
        %718 = vst [vmem:[%s298 + $0x30] sm:$0xff] %v681
        %719 = vst [vmem:[%s298 + $0x38] sm:$0xff] %v710
        %s720 = sand.u32 %s184, 1
        %s721 = scalar_lea.sflag [#allocation4], %s720
        %s722 = sand.u32 %s184, 1
        %s723 = smul.addr %s722, 64
        %s724 = scalar_lea.vmem [#allocation5], %s723
        // Predicated region
        $region53: #{tpu_custom_call.1} parent=47 // pred_check
          %p725 = pneg %p194
        $region54: #{tpu_custom_call.1} parent=47 // pred_check_branch
          %727 = sbr.rel (%p725) target = $region56
        $region55: #{tpu_custom_call.1} parent=47 // pred_region
          %729 = vsyncadd %s721, 0
          %s730 = smul.addr %s24, 8
          %s731 = smul.addr %s730, 8
          %s732 = scalar_lea.hbm %s7, %s731
          %s733 = sshll.u32 %s724, 4
          %s734 = int_to_ptr.vmem [resolvable:$true] %s733
          %s735 = sshll.u32 %s732, 4
          %s736 = int_to_ptr.hbm [resolvable:$true] %s735
          %741 = dma.vmem_to_hbm [thread:$0]  %s734, 1024, %s736, %s721, 256, 256, 16
        $region56: #{tpu_custom_call.1} parent=47 // pred_fallthru
          _
      $region48: #{tpu_custom_call.1} parent=5 // pred_fallthru
        _
      %p742 = scmp.le.s32.totalorder 2, %s19
      // Predicated region
      $region57: #{tpu_custom_call.1} parent=5 // pred_check
        %p743 = pneg %p742
      $region58: #{tpu_custom_call.1} parent=5 // pred_check_branch
        %745 = sbr.rel (%p743) target = $region60
      $region59: #{tpu_custom_call.1} parent=5 // pred_region
        %s746 = ssub.s32 %s19, 2
        // Predicated region
        $region61: #{tpu_custom_call.1} parent=59 // pred_check
          %p747 = pneg %p200
        $region62: #{tpu_custom_call.1} parent=59 // pred_check_branch
          %749 = sbr.rel (%p747) target = $region64
        $region63: #{tpu_custom_call.1} parent=59 // pred_region
          %s750 = sand.u32 %s185, 1
          %s751 = scalar_lea.sflag [#allocation4], %s750
          %s752 = sand.u32 %s185, 1
          %s753 = smul.addr %s752, 64
          %s754 = scalar_lea.vmem [#allocation5], %s753
          %756 = dma.done %s751, 1024
        $region64: #{tpu_custom_call.1} parent=59 // pred_fallthru
          _
      $region60: #{tpu_custom_call.1} parent=5 // pred_fallthru
        _
    $region6: #{tpu_custom_call.1} parent=1 // loop_footer
      %s23 = sadd.s32 1, %s19
    $region7: #{tpu_custom_call.1} parent=1 // loop_footer_branch
      %18 = sbr.rel target = $region3
    $region8: #{tpu_custom_call.1} parent=1 // loop_exit
      _
    %757 = vsyncpa [#allocation3], 1
    %s758 = scalar_lea.sflag [#allocation3], 1
    %759 = vsyncpa %s758, 1
    %760 = vsyncpa [#allocation4], 1
    %s761 = scalar_lea.sflag [#allocation4], 1
    %762 = vsyncpa %s761, 1

</llo_original>
